<compile_context>
chip_gen: v6e
topology: v6e:2x2x1
jax: 0.10.0
libtpu: 0.0.40
codegen_flags: <defaults>
</compile_context>

<pallas_src>
import jax
import jax.numpy as jnp
from jax.experimental import pallas as pl
from jax.experimental.pallas import tpu as pltpu

FLAT = 320          # 20 * 4 * 4, torch .view(-1, 320)
HIDDEN = 50
HIDDEN_PAD = 128    # fc1 hidden 50 zero-padded to a full lane tile
NUM_CLASSES = 10
CLASS_PAD = 128     # fc2 classes 10 padded to a full lane tile (lane-dense store)
NEG_BIG = -1e30     # finite sentinel for padded class lanes (avoids inf-inf)


# ---------------------------------------------------------------------------
# Fused kernel: relu -> fc1 -> relu -> fc2 -> log_softmax
# (the 2x2 max-pool is folded into the wrapper-side relayout of the raw input)
# ---------------------------------------------------------------------------
def _network2_kernel(z3_ref, w1_ref, b1_ref, w2_ref, b2_ref, out_ref):
    # z3_ref: (bn, 320) bf16, already max-pooled, in torch flatten order (c,h2,w2).
    z3 = jnp.maximum(z3_ref[...], 0.0)                       # relu, exact in bf16

    # fc1 (hidden padded 50 -> 128), f32 accumulate + f32 bias/relu epilogue.
    z4 = jnp.dot(z3, w1_ref[...], preferred_element_type=jnp.float32) + b1_ref[...]
    z4 = jnp.maximum(z4, 0.0)                                # (bn, 128) f32
    # TODO(synk): dropout treated as identity (eval mode).

    # fc2: bf16 MXU operands, K=128 / N=128 full tiles (padded rows/cols are zero,
    # padded class lanes carry a -1e30 bias so they vanish in the softmax).
    z5 = jnp.dot(z4.astype(jnp.bfloat16), w2_ref[...],
                 preferred_element_type=jnp.float32) + b2_ref[...]

    # Numerically stable log_softmax over all 128 lanes (padded lanes exp to 0).
    m = jnp.max(z5, axis=-1, keepdims=True)
    s = z5 - m
    lse = jnp.log(jnp.sum(jnp.exp(s), axis=-1, keepdims=True))
    out_ref[...] = (s - lse).astype(out_ref.dtype)


# ---------------------------------------------------------------------------
# Batch tiling: small batches -> one step; medium -> 512-row tiles so v7x's
# two TensorCores both get work; large -> 1024-row tiles (per-step overhead
# ~0.35 us amortized, mem-bound efficiency ~86% of roofline at 1024).
# ---------------------------------------------------------------------------
def _batch_tiling(n):
    n8 = ((n + 7) // 8) * 8                 # sublane multiple
    if n8 <= 512:
        bn = n8
    elif n8 <= 2048:
        bn = 512
    else:
        bn = 1024
    n_pad = ((n8 + bn - 1) // bn) * bn      # zero-padded remainder tile
    return bn, n_pad


# ---------------------------------------------------------------------------
# One-time parameter padding (kept OUT of the per-forward jitted path).
# ---------------------------------------------------------------------------
def prepare_params(params):
    w1p = (jnp.zeros((FLAT, HIDDEN_PAD), jnp.bfloat16)
           .at[:, :HIDDEN].set(params["fc1_w"].T.astype(jnp.bfloat16)))
    b1p = (jnp.zeros((1, HIDDEN_PAD), jnp.float32)
           .at[:, :HIDDEN].set(params["fc1_b"][None, :].astype(jnp.float32)))
    w2p = (jnp.zeros((HIDDEN_PAD, CLASS_PAD), jnp.bfloat16)
           .at[:HIDDEN, :NUM_CLASSES].set(params["fc2_w"].T.astype(jnp.bfloat16)))
    b2p = (jnp.full((1, CLASS_PAD), NEG_BIG, jnp.float32)
           .at[:, :NUM_CLASSES].set(params["fc2_b"][None, :].astype(jnp.float32)))
    return {"w1p": w1p, "b1p": b1p, "w2p": w2p, "b2p": b2p}


# ---------------------------------------------------------------------------
# Forward wrapper
# ---------------------------------------------------------------------------
@jax.jit
def network2_forward(padded_params, x):
    """x: NCHW (N, C, H, W) with C*(H//2)*(W//2) == 320 (canonical (N, 20, 8, 8))."""
    n, c, h, w = x.shape
    assert c * (h // 2) * (w // 2) == FLAT, (c, h, w)

    # Fold the 2x2 max-pool into the (only) XLA-side relayout of the raw input,
    # emitting the reduced (N, 320) slab in torch flatten order (c, h2, w2),
    # then carry the activation stream in bf16 (pool-max/relu are exact; matmul
    # accumulates in f32 in-kernel).
    pooled = (x.astype(jnp.float32)
              .reshape(n, c, h // 2, 2, w // 2, 2)
              .max(axis=(3, 5))
              .reshape(n, FLAT)
              .astype(jnp.bfloat16))

    bn, n_pad = _batch_tiling(n)
    if n_pad != n:
        pooled = jnp.pad(pooled, ((0, n_pad - n), (0, 0)))   # zero rows -> finite, sliced off
    grid = (n_pad // bn,)

    out = pl.pallas_call(
        _network2_kernel,
        out_shape=jax.ShapeDtypeStruct((n_pad, CLASS_PAD), jnp.float32),
        grid=grid,
        in_specs=[
            pl.BlockSpec((bn, FLAT), lambda i: (i, 0)),                # pooled activations (bf16)
            pl.BlockSpec((FLAT, HIDDEN_PAD), lambda i: (0, 0)),        # fc1 weight (bf16, padded)
            pl.BlockSpec((1, HIDDEN_PAD), lambda i: (0, 0)),           # fc1 bias (f32, padded)
            pl.BlockSpec((HIDDEN_PAD, CLASS_PAD), lambda i: (0, 0)),   # fc2 weight (bf16, padded K,N)
            pl.BlockSpec((1, CLASS_PAD), lambda i: (0, 0)),            # fc2 bias (f32, -1e30 sentinel)
        ],
        out_specs=pl.BlockSpec((bn, CLASS_PAD), lambda i: (i, 0)),
        compiler_params=pltpu.CompilerParams(
            dimension_semantics=("parallel",),        # batch axis: megacore-shardable on v7x
            vmem_limit_bytes=32 * 1024 * 1024,        # explicit; actual need ~2.5 MB at bn=1024
        ),
    )(pooled, padded_params["w1p"], padded_params["b1p"],
      padded_params["w2p"], padded_params["b2p"])

    return out[:n, :NUM_CLASSES]


# ---------------------------------------------------------------------------
# References
# ---------------------------------------------------------------------------
def reference_forward_f32(params, x):
    """Exact f32 mirror of the torch forward (eval mode)."""
    n, c, h, w = x.shape
    p = x.astype(jnp.float32).reshape(n, c, h // 2, 2, w // 2, 2).max(axis=(3, 5))
    z3 = jnp.maximum(p, 0.0).reshape(n, FLAT)
    z4 = jnp.maximum(z3 @ params["fc1_w"].T + params["fc1_b"], 0.0)
    z5 = z4 @ params["fc2_w"].T + params["fc2_b"]
    return jax.nn.log_softmax(z5, axis=1)


def reference_forward_bf16_matched(params, x):
    """Same bf16 operand rounding as the kernel (f32 accumulate) — tight check."""
    n, c, h, w = x.shape
    p = x.astype(jnp.float32).reshape(n, c, h // 2, 2, w // 2, 2).max(axis=(3, 5))
    z3 = jnp.maximum(p.reshape(n, FLAT), 0.0).astype(jnp.bfloat16)
    w1 = params["fc1_w"].T.astype(jnp.bfloat16)
    z4 = jnp.dot(z3, w1, preferred_element_type=jnp.float32) + params["fc1_b"]
    z4 = jnp.maximum(z4, 0.0).astype(jnp.bfloat16)
    w2 = params["fc2_w"].T.astype(jnp.bfloat16)
    z5 = jnp.dot(z4, w2, preferred_element_type=jnp.float32) + params["fc2_b"]
    return jax.nn.log_softmax(z5, axis=1)


# ---------------------------------------------------------------------------
# Deterministic params (shapes of nn.Linear(320, 50), nn.Linear(50, 10))
# ---------------------------------------------------------------------------
def init_params(key):
    k1, k2, k3, k4 = jax.random.split(key, 4)
    return {
        "fc1_w": 0.05 * jax.random.normal(k1, (HIDDEN, FLAT), jnp.float32),
        "fc1_b": 0.05 * jax.random.normal(k2, (HIDDEN,), jnp.float32),
        "fc2_w": 0.10 * jax.random.normal(k3, (NUM_CLASSES, HIDDEN), jnp.float32),
        "fc2_b": 0.10 * jax.random.normal(k4, (NUM_CLASSES,), jnp.float32),
    }


if __name__ == "__main__":
    key = jax.random.PRNGKey(0)
    k_param, k_x = jax.random.split(key)
    params = init_params(k_param)
    padded_params = prepare_params(params)   # once, outside the per-forward path

    # Network2's input is the stage-1 feature map: NCHW (N, 20, 8, 8)
    # (20 * 4 * 4 = 320 after the 2x2 pool, matching fc1).
    x = jax.random.normal(k_x, (2, 20, 8, 8), jnp.float32)

    out = jax.block_until_ready(network2_forward(padded_params, x))
    assert out.shape == (2, NUM_CLASSES), out.shape
    assert bool(jnp.all(jnp.isfinite(out)))

    # Tight check vs. a bf16-operand-matched reference (same rounding as kernel).
    ref_bf16 = reference_forward_bf16_matched(params, x)
    assert bool(jnp.all(jnp.abs(out - ref_bf16) < 1e-3)), \
        float(jnp.max(jnp.abs(out - ref_bf16)))

    # Loose check vs. the exact f32 torch-semantics reference (bf16 stream error).
    ref_f32 = reference_forward_f32(params, x)
    assert bool(jnp.all(jnp.abs(out - ref_f32) < 3e-2)), \
        float(jnp.max(jnp.abs(out - ref_f32)))

    # log_softmax rows must exponentiate-sum to 1.
    assert bool(jnp.all(jnp.abs(jnp.sum(jnp.exp(out), axis=1) - 1.0) < 1e-3))

    print("KERNEL_OK")
</pallas_src>

<mosaic_0001>
module attributes {stable_mosaic.version = 11 : i64} {
  func.func @_network2_kernel(%arg0: i32, %arg1: memref<8x320xbf16, #tpu.memory_space<vmem>>, %arg2: memref<320x128xbf16, #tpu.memory_space<vmem>>, %arg3: memref<1x128xf32, #tpu.memory_space<vmem>>, %arg4: memref<128x128xbf16, #tpu.memory_space<vmem>>, %arg5: memref<1x128xf32, #tpu.memory_space<vmem>>, %arg6: memref<8x128xf32, #tpu.memory_space<vmem>>) attributes {dimension_semantics = [#tpu.dimension_semantics<parallel>], iteration_bounds = array<i64: 1>, scalar_prefetch = 0 : i64, scratch_operands = 0 : i64, tpu.core_type = #tpu.core_type<tc>, window_params = [{transform_indices = @transform_0, window_bounds = array<i64: 8, 320>}, {pipeline_mode = #tpu.pipeline_mode<synchronous>, transform_indices = @transform_1, window_bounds = array<i64: 320, 128>}, {pipeline_mode = #tpu.pipeline_mode<synchronous>, transform_indices = @transform_2, window_bounds = array<i64: 1, 128>}, {pipeline_mode = #tpu.pipeline_mode<synchronous>, transform_indices = @transform_3, window_bounds = array<i64: 128, 128>}, {pipeline_mode = #tpu.pipeline_mode<synchronous>, transform_indices = @transform_4, window_bounds = array<i64: 1, 128>}, {transform_indices = @transform_5, window_bounds = array<i64: 8, 128>}]} {
    %c0 = arith.constant 0 : index
    %c0_0 = arith.constant 0 : index
    %0 = vector.load %arg1[%c0, %c0_0] : memref<8x320xbf16, #tpu.memory_space<vmem>>, vector<8x320xbf16>
    %cst = arith.constant 0.000000e+00 : bf16
    %1 = vector.broadcast %cst : bf16 to vector<8x320xbf16>
    %2 = arith.maximumf %0, %1 : vector<8x320xbf16>
    %c0_1 = arith.constant 0 : index
    %c0_2 = arith.constant 0 : index
    %3 = vector.load %arg2[%c0_1, %c0_2] : memref<320x128xbf16, #tpu.memory_space<vmem>>, vector<320x128xbf16>
    %cst_3 = arith.constant dense<0.000000e+00> : vector<8x128xf32>
    %4 = tpu.matmul %2, %3, %cst_3 {dimension_numbers = #tpu.dot_dimension_numbers<[1], [0], [0], [1], [0, 0, 1, 1], [], []>} : vector<8x320xbf16>, vector<320x128xbf16>, vector<8x128xf32> -> vector<8x128xf32>
    %c0_4 = arith.constant 0 : index
    %c0_5 = arith.constant 0 : index
    %5 = vector.load %arg3[%c0_4, %c0_5] : memref<1x128xf32, #tpu.memory_space<vmem>>, vector<1x128xf32>
    %6 = vector.broadcast %5 : vector<1x128xf32> to vector<8x128xf32>
    %7 = arith.addf %4, %6 : vector<8x128xf32>
    %cst_6 = arith.constant 0.000000e+00 : f32
    %8 = vector.broadcast %cst_6 : f32 to vector<8x128xf32>
    %9 = arith.maximumf %7, %8 : vector<8x128xf32>
    %10 = arith.truncf %9 : vector<8x128xf32> to vector<8x128xbf16>
    %c0_7 = arith.constant 0 : index
    %c0_8 = arith.constant 0 : index
    %11 = vector.load %arg4[%c0_7, %c0_8] : memref<128x128xbf16, #tpu.memory_space<vmem>>, vector<128x128xbf16>
    %cst_9 = arith.constant dense<0.000000e+00> : vector<8x128xf32>
    %12 = tpu.matmul %10, %11, %cst_9 {dimension_numbers = #tpu.dot_dimension_numbers<[1], [0], [0], [1], [0, 0, 1, 1], [], []>} : vector<8x128xbf16>, vector<128x128xbf16>, vector<8x128xf32> -> vector<8x128xf32>
    %c0_10 = arith.constant 0 : index
    %c0_11 = arith.constant 0 : index
    %13 = vector.load %arg5[%c0_10, %c0_11] : memref<1x128xf32, #tpu.memory_space<vmem>>, vector<1x128xf32>
    %14 = vector.broadcast %13 : vector<1x128xf32> to vector<8x128xf32>
    %15 = arith.addf %12, %14 : vector<8x128xf32>
    %cst_12 = arith.constant dense<0xFF800000> : vector<8xf32>
    %16 = vector.multi_reduction <maximumf>, %15, %cst_12 [1] : vector<8x128xf32> to vector<8xf32>
    %17 = vector.shape_cast %16 : vector<8xf32> to vector<8x1xf32>
    %18 = vector.broadcast %17 : vector<8x1xf32> to vector<8x128xf32>
    %19 = arith.subf %15, %18 : vector<8x128xf32>
    %20 = math.exp %19 : vector<8x128xf32>
    %cst_13 = arith.constant dense<0.000000e+00> : vector<8xf32>
    %21 = vector.multi_reduction <add>, %20, %cst_13 [1] : vector<8x128xf32> to vector<8xf32>
    %22 = vector.shape_cast %21 : vector<8xf32> to vector<8x1xf32>
    %23 = math.log %22 : vector<8x1xf32>
    %24 = vector.broadcast %23 : vector<8x1xf32> to vector<8x128xf32>
    %25 = arith.subf %19, %24 : vector<8x128xf32>
    %c0_14 = arith.constant 0 : index
    %c0_15 = arith.constant 0 : index
    %26 = vector.load %arg6[%c0_14, %c0_15] : memref<8x128xf32, #tpu.memory_space<vmem>>, vector<8x128xf32>
    tpu.vector_store %arg6[%c0_14, %c0_15], %25 {strides = array<i32>} : memref<8x128xf32, #tpu.memory_space<vmem>>, vector<8x128xf32>,
    return
  }
  func.func @transform_0(%arg0: i32) -> (i32, i32) {
    %c0_i32 = arith.constant 0 : i32
    %c0_i32_0 = arith.constant 0 : i32
    return %arg0, %c0_i32 : i32, i32
  }
  func.func @transform_1(%arg0: i32) -> (i32, i32) {
    %c0_i32 = arith.constant 0 : i32
    %c0_i32_0 = arith.constant 0 : i32
    %c0_i32_1 = arith.constant 0 : i32
    return %c0_i32, %c0_i32_0 : i32, i32
  }
  func.func @transform_2(%arg0: i32) -> (i32, i32) {
    %c0_i32 = arith.constant 0 : i32
    %c0_i32_0 = arith.constant 0 : i32
    %c0_i32_1 = arith.constant 0 : i32
    return %c0_i32, %c0_i32_0 : i32, i32
  }
  func.func @transform_3(%arg0: i32) -> (i32, i32) {
    %c0_i32 = arith.constant 0 : i32
    %c0_i32_0 = arith.constant 0 : i32
    %c0_i32_1 = arith.constant 0 : i32
    return %c0_i32, %c0_i32_0 : i32, i32
  }
  func.func @transform_4(%arg0: i32) -> (i32, i32) {
    %c0_i32 = arith.constant 0 : i32
    %c0_i32_0 = arith.constant 0 : i32
    %c0_i32_1 = arith.constant 0 : i32
    return %c0_i32, %c0_i32_0 : i32, i32
  }
  func.func @transform_5(%arg0: i32) -> (i32, i32) {
    %c0_i32 = arith.constant 0 : i32
    %c0_i32_0 = arith.constant 0 : i32
    return %arg0, %c0_i32 : i32, i32
  }
}

</mosaic_0001>

<llo_original>
// kernel: network2_forward.1
$region0: #{network2_forward.1}
  #allocation0 [shape = 'u32[]', space=smem, size = 0x4, offset = 0x4, fixed_abs, tag = 'smem constant byte address 0x4 - core index']
  #allocation1 [shape = 'u32[144,128]{1,0:T(1,128)}', space=vmem, size = 0x12000, scoped, tag = 'internal scratch']
  %s0 = inlined_call_operand.vmem [shape: bf16[8,320], index: 0, kind: input, shape index: {}]
  %s1 = inlined_call_operand.vmem [shape: bf16[320,128], index: 1, kind: input, shape index: {}]
  %s2 = inlined_call_operand.vmem [shape: f32[1,128], index: 2, kind: input, shape index: {}]
  %s3 = inlined_call_operand.vmem [shape: bf16[128,128], index: 3, kind: input, shape index: {}]
  %s4 = inlined_call_operand.vmem [shape: f32[1,128], index: 4, kind: input, shape index: {}]
  %s5 = inlined_call_operand.vmem [shape: f32[8,128], index: 5, kind: output, shape index: {}]
  %s6 = sld [smem:[#allocation0]]
  $region30: #{network2_forward.1} parent=0
    _
  %s8 = ssub.s32 1, %s6
  %s9 = scalar_select 0, %s8, %s6
  // Predicated region
  $region2: #{network2_forward.1} parent=0 // pred_check
    _
  $region3: #{network2_forward.1} parent=0 // pred_check_branch
    %11 = sbr.rel (0) target = $region5
  $region4: #{network2_forward.1} parent=0 // pred_region
    _
  $region5: #{network2_forward.1} parent=0 // pred_fallthru
    _
  // Predicated region
  $region6: #{network2_forward.1} parent=0 // pred_check
    _
  $region7: #{network2_forward.1} parent=0 // pred_check_branch
    %13 = sbr.rel (0) target = $region9
  $region8: #{network2_forward.1} parent=0 // pred_region
    _
  $region9: #{network2_forward.1} parent=0 // pred_fallthru
    _
  // Predicated region
  $region10: #{network2_forward.1} parent=0 // pred_check
    _
  $region11: #{network2_forward.1} parent=0 // pred_check_branch
    %15 = sbr.rel (0) target = $region13
  $region12: #{network2_forward.1} parent=0 // pred_region
    _
  $region13: #{network2_forward.1} parent=0 // pred_fallthru
    _
  // Predicated region
  $region14: #{network2_forward.1} parent=0 // pred_check
    _
  $region15: #{network2_forward.1} parent=0 // pred_check_branch
    %17 = sbr.rel (0) target = $region17
  $region16: #{network2_forward.1} parent=0 // pred_region
    _
  $region17: #{network2_forward.1} parent=0 // pred_fallthru
    _
  // Predicated region
  $region18: #{network2_forward.1} parent=0 // pred_check
    _
  $region19: #{network2_forward.1} parent=0 // pred_check_branch
    %19 = sbr.rel (0) target = $region21
  $region20: #{network2_forward.1} parent=0 // pred_region
    _
  $region21: #{network2_forward.1} parent=0 // pred_fallthru
    _
  %v21 = vld [vmem:[%s0] sm:$0xff]
  %v22 = vld [vmem:[%s0 + $0x8] sm:$0xf]
  %v23 = vmax.bf16 %v21, 0
  %v24 = vmax.bf16 %v22, 0
  %v25 = vld [vmem:[%s1] sm:$0xf]
  %v26 = vld [vmem:[%s1 + $0x4] sm:$0xf]
  %v27 = vld [vmem:[%s1 + $0x8] sm:$0xf]
  %v28 = vld [vmem:[%s1 + $0xc] sm:$0xf]
  %v29 = vld [vmem:[%s1 + $0x10] sm:$0xf]
  %v30 = vld [vmem:[%s1 + $0x14] sm:$0xf]
  %v31 = vld [vmem:[%s1 + $0x18] sm:$0xf]
  %v32 = vld [vmem:[%s1 + $0x1c] sm:$0xf]
  %v33 = vld [vmem:[%s1 + $0x20] sm:$0xf]
  %v34 = vld [vmem:[%s1 + $0x24] sm:$0xf]
  %v35 = vld [vmem:[%s1 + $0x28] sm:$0xf]
  %v36 = vld [vmem:[%s1 + $0x2c] sm:$0xf]
  %v37 = vld [vmem:[%s1 + $0x30] sm:$0xf]
  %v38 = vld [vmem:[%s1 + $0x34] sm:$0xf]
  %v39 = vld [vmem:[%s1 + $0x38] sm:$0xf]
  %v40 = vld [vmem:[%s1 + $0x3c] sm:$0xf]
  %v41 = vld [vmem:[%s1 + $0x40] sm:$0xf]
  %v42 = vld [vmem:[%s1 + $0x44] sm:$0xf]
  %v43 = vld [vmem:[%s1 + $0x48] sm:$0xf]
  %v44 = vld [vmem:[%s1 + $0x4c] sm:$0xf]
  %v45 = vld [vmem:[%s1 + $0x50] sm:$0xf]
  %v46 = vld [vmem:[%s1 + $0x54] sm:$0xf]
  %v47 = vld [vmem:[%s1 + $0x58] sm:$0xf]
  %v48 = vld [vmem:[%s1 + $0x5c] sm:$0xf]
  %v49 = vld [vmem:[%s1 + $0x60] sm:$0xf]
  %v50 = vld [vmem:[%s1 + $0x64] sm:$0xf]
  %v51 = vld [vmem:[%s1 + $0x68] sm:$0xf]
  %v52 = vld [vmem:[%s1 + $0x6c] sm:$0xf]
  %v53 = vld [vmem:[%s1 + $0x70] sm:$0xf]
  %v54 = vld [vmem:[%s1 + $0x74] sm:$0xf]
  %v55 = vld [vmem:[%s1 + $0x78] sm:$0xf]
  %v56 = vld [vmem:[%s1 + $0x7c] sm:$0xf]
  %v57 = vld [vmem:[%s1 + $0x80] sm:$0xf]
  %v58 = vld [vmem:[%s1 + $0x84] sm:$0xf]
  %v59 = vld [vmem:[%s1 + $0x88] sm:$0xf]
  %v60 = vld [vmem:[%s1 + $0x8c] sm:$0xf]
  %v61 = vld [vmem:[%s1 + $0x90] sm:$0xf]
  %v62 = vld [vmem:[%s1 + $0x94] sm:$0xf]
  %v63 = vld [vmem:[%s1 + $0x98] sm:$0xf]
  %v64 = vld [vmem:[%s1 + $0x9c] sm:$0xf]
  %v65 = vld [vmem:[%s2] sm:$0x1]
  %v67 = vlaneseq
  %v68 = vshrl.u32 %v67, 7
  %v69 = vsub.s32 0, %v68
  %v70 = vrot.slane %v65, %v69
  %v74 = vunpack.c.l.b16 %v23
  %v75 = vunpack.c.h.b16 %v23
  %v76 = vunpack.c.l.b16 %v24
  %v77 = vpack.c.b16 %v74, %v74
  %v78 = vpack.c.b16 %v75, %v75
  %v79 = vpack.c.b16 %v76, %v76
  %v122 = vunpack.c.l.b16 %v25
  %v123 = vunpack.c.l.b16 %v26
  %v124 = vunpack.c.l.b16 %v27
  %v125 = vunpack.c.l.b16 %v28
  %v126 = vunpack.c.l.b16 %v29
  %v127 = vunpack.c.l.b16 %v30
  %v128 = vunpack.c.l.b16 %v31
  %v129 = vunpack.c.l.b16 %v32
  %v130 = vunpack.c.l.b16 %v33
  %v131 = vunpack.c.l.b16 %v34
  %v132 = vunpack.c.l.b16 %v35
  %v133 = vunpack.c.l.b16 %v36
  %v134 = vunpack.c.l.b16 %v37
  %v135 = vunpack.c.l.b16 %v38
  %v136 = vunpack.c.l.b16 %v39
  %v137 = vunpack.c.l.b16 %v40
  %v138 = vunpack.c.l.b16 %v41
  %v139 = vunpack.c.l.b16 %v42
  %v140 = vunpack.c.l.b16 %v43
  %v141 = vunpack.c.l.b16 %v44
  %v142 = vunpack.c.l.b16 %v45
  %v143 = vunpack.c.l.b16 %v46
  %v144 = vunpack.c.l.b16 %v47
  %v145 = vunpack.c.l.b16 %v48
  %v146 = vunpack.c.l.b16 %v49
  %v147 = vunpack.c.l.b16 %v50
  %v148 = vunpack.c.l.b16 %v51
  %v149 = vunpack.c.l.b16 %v52
  %v150 = vunpack.c.l.b16 %v53
  %v151 = vunpack.c.l.b16 %v54
  %v152 = vunpack.c.l.b16 %v55
  %v153 = vunpack.c.l.b16 %v56
  %v154 = vunpack.c.l.b16 %v57
  %v155 = vunpack.c.l.b16 %v58
  %v156 = vunpack.c.l.b16 %v59
  %v157 = vunpack.c.l.b16 %v60
  %v158 = vunpack.c.l.b16 %v61
  %v159 = vunpack.c.l.b16 %v62
  %v160 = vunpack.c.l.b16 %v63
  %v161 = vunpack.c.l.b16 %v64
  %v162 = vpack.c.b16 %v123, %v122
  %v163 = vpack.c.b16 %v125, %v124
  %v164 = vpack.c.b16 %v127, %v126
  %v165 = vpack.c.b16 %v129, %v128
  %v166 = vpack.c.b16 %v131, %v130
  %v167 = vpack.c.b16 %v133, %v132
  %v168 = vpack.c.b16 %v135, %v134
  %v169 = vpack.c.b16 %v137, %v136
  %v170 = vpack.c.b16 %v139, %v138
  %v171 = vpack.c.b16 %v141, %v140
  %v172 = vpack.c.b16 %v143, %v142
  %v173 = vpack.c.b16 %v145, %v144
  %v174 = vpack.c.b16 %v147, %v146
  %v175 = vpack.c.b16 %v149, %v148
  %v176 = vpack.c.b16 %v151, %v150
  %v177 = vpack.c.b16 %v153, %v152
  %v178 = vpack.c.b16 %v155, %v154
  %v179 = vpack.c.b16 %v157, %v156
  %v180 = vpack.c.b16 %v159, %v158
  %v181 = vpack.c.b16 %v161, %v160
  %vm202 = vcmask 523264
  %v204 = vsel %vm202, %v79, 0
  %206 = vmatprep.subr.bf16.mxu0 0
  %207 = vmatpush1.bf16.msra.mxu0 %v169
  %208 = vmatprep.subr.bf16.mxu0 0
  %209 = vmatpush1.bf16.msra.mxu0 %v168
  %210 = vmatprep.subr.bf16.mxu0 0
  %211 = vmatpush1.bf16.msra.mxu0 %v167
  %212 = vmatprep.subr.bf16.mxu0 0
  %213 = vmatpush1.bf16.msra.mxu0 %v166
  %214 = vmatprep.subr.bf16.mxu0 0
  %215 = vmatpush1.bf16.msra.mxu0 %v165
  %216 = vmatprep.subr.bf16.mxu0 0
  %217 = vmatpush1.bf16.msra.mxu0 %v164
  %218 = vmatprep.subr.bf16.mxu0 0
  %219 = vmatpush1.bf16.msra.mxu0 %v163
  %220 = vmatprep.subr.bf16.mxu0 0
  %221 = vmatpush1.bf16.msra.mxu0 %v162
  %222 = vmatprep.subr.bf16.mxu0 0
  %223 = vmatpush2.bf16.msra.mxu0 %v177
  %224 = vmatprep.subr.bf16.mxu0 0
  %225 = vmatpush2.bf16.msra.mxu0 %v176
  %226 = vmatprep.subr.bf16.mxu0 0
  %227 = vmatpush2.bf16.msra.mxu0 %v175
  %228 = vmatprep.subr.bf16.mxu0 0
  %229 = vmatpush2.bf16.msra.mxu0 %v174
  %230 = vmatprep.subr.bf16.mxu0 0
  %231 = vmatpush2.bf16.msra.mxu0 %v173
  %232 = vmatprep.subr.bf16.mxu0 0
  %233 = vmatpush2.bf16.msra.mxu0 %v172
  %234 = vmatprep.subr.bf16.mxu0 0
  %235 = vmatpush2.bf16.msra.mxu0 %v171
  %236 = vmatprep.subr.bf16.mxu0 0
  %237 = vmatpush2.bf16.msra.mxu0 %v170
  %238 = vmatprep.mubr.bf16.mxu0 %v78
  %239 = vmatmul.mubr.bf16.gmra.mxu0 %v77
  %v240 = vpop.f32.mrf.mxu0
  %v241 = vadd.f32 %v70, %v240
  %v242 = vpop.f32.mrf.mxu0
  %v243 = vpop.f32.mrf.mxu0
  %v244 = vpop.f32.mrf.mxu0
  %245 = vdwg.mxu0
  %246 = vmatprep.subr.bf16.mxu0 0
  %247 = vmatpush1.bf16.msra.mxu0 0
  %248 = vmatprep.subr.bf16.mxu0 0
  %249 = vmatpush1.bf16.msra.mxu0 0
  %250 = vmatprep.subr.bf16.mxu0 0
  %251 = vmatpush1.bf16.msra.mxu0 0
  %252 = vmatprep.subr.bf16.mxu0 0
  %253 = vmatpush1.bf16.msra.mxu0 0
  %254 = vmatprep.subr.bf16.mxu0 0
  %255 = vmatpush1.bf16.msra.mxu0 %v181
  %256 = vmatprep.subr.bf16.mxu0 0
  %257 = vmatpush1.bf16.msra.mxu0 %v180
  %258 = vmatprep.subr.bf16.mxu0 0
  %259 = vmatpush1.bf16.msra.mxu0 %v179
  %260 = vmatprep.subr.bf16.mxu0 0
  %261 = vmatpush1.bf16.msra.mxu0 %v178
  %262 = vmatprep.subr.bf16.mxu0 0
  %263 = vmatpush2.bf16.msra.mxu0 0
  %264 = vmatprep.subr.bf16.mxu0 0
  %265 = vmatpush2.bf16.msra.mxu0 0
  %266 = vmatprep.subr.bf16.mxu0 0
  %267 = vmatpush2.bf16.msra.mxu0 0
  %268 = vmatprep.subr.bf16.mxu0 0
  %269 = vmatpush2.bf16.msra.mxu0 0
  %270 = vmatprep.subr.bf16.mxu0 0
  %271 = vmatpush2.bf16.msra.mxu0 0
  %272 = vmatprep.subr.bf16.mxu0 0
  %273 = vmatpush2.bf16.msra.mxu0 0
  %274 = vmatprep.subr.bf16.mxu0 0
  %275 = vmatpush2.bf16.msra.mxu0 0
  %276 = vmatprep.subr.bf16.mxu0 0
  %277 = vmatpush2.bf16.msra.mxu0 0
  %278 = vmatprep.mubr.bf16.mxu0 0
  %279 = vmatmul.mubr.bf16.gmra.mxu0 %v204
  %v280 = vpop.f32.mrf.mxu0
  %v281 = vadd.f32 %v241, %v280
  %v282 = vpop.f32.mrf.mxu0
  %v283 = vpop.f32.mrf.mxu0
  %v284 = vpop.f32.mrf.mxu0
  %285 = vdwg.mxu0
  %v286 = vmax.f32 %v281, 0.0
  %v287 = vpack.c.bf16 %v286, %v286
  %v288 = vld [vmem:[%s3] sm:$0xf]
  %v289 = vld [vmem:[%s3 + $0x4] sm:$0xf]
  %v290 = vld [vmem:[%s3 + $0x8] sm:$0xf]
  %v291 = vld [vmem:[%s3 + $0xc] sm:$0xf]
  %v292 = vld [vmem:[%s3 + $0x10] sm:$0xf]
  %v293 = vld [vmem:[%s3 + $0x14] sm:$0xf]
  %v294 = vld [vmem:[%s3 + $0x18] sm:$0xf]
  %v295 = vld [vmem:[%s3 + $0x1c] sm:$0xf]
  %v296 = vld [vmem:[%s3 + $0x20] sm:$0xf]
  %v297 = vld [vmem:[%s3 + $0x24] sm:$0xf]
  %v298 = vld [vmem:[%s3 + $0x28] sm:$0xf]
  %v299 = vld [vmem:[%s3 + $0x2c] sm:$0xf]
  %v300 = vld [vmem:[%s3 + $0x30] sm:$0xf]
  %v301 = vld [vmem:[%s3 + $0x34] sm:$0xf]
  %v302 = vld [vmem:[%s3 + $0x38] sm:$0xf]
  %v303 = vld [vmem:[%s3 + $0x3c] sm:$0xf]
  %v304 = vld [vmem:[%s4] sm:$0x1]
  %v306 = vlaneseq
  %v307 = vshrl.u32 %v306, 7
  %v308 = vsub.s32 0, %v307
  %v309 = vrot.slane %v304, %v308
  %v327 = vunpack.c.l.b16 %v288
  %v328 = vunpack.c.l.b16 %v289
  %v329 = vunpack.c.l.b16 %v290
  %v330 = vunpack.c.l.b16 %v291
  %v331 = vunpack.c.l.b16 %v292
  %v332 = vunpack.c.l.b16 %v293
  %v333 = vunpack.c.l.b16 %v294
  %v334 = vunpack.c.l.b16 %v295
  %v335 = vunpack.c.l.b16 %v296
  %v336 = vunpack.c.l.b16 %v297
  %v337 = vunpack.c.l.b16 %v298
  %v338 = vunpack.c.l.b16 %v299
  %v339 = vunpack.c.l.b16 %v300
  %v340 = vunpack.c.l.b16 %v301
  %v341 = vunpack.c.l.b16 %v302
  %v342 = vunpack.c.l.b16 %v303
  %v343 = vpack.c.b16 %v328, %v327
  %v344 = vpack.c.b16 %v330, %v329
  %v345 = vpack.c.b16 %v332, %v331
  %v346 = vpack.c.b16 %v334, %v333
  %v347 = vpack.c.b16 %v336, %v335
  %v348 = vpack.c.b16 %v338, %v337
  %v349 = vpack.c.b16 %v340, %v339
  %v350 = vpack.c.b16 %v342, %v341
  %359 = vmatprep.subr.bf16.mxu0 0
  %360 = vmatpush1.bf16.msra.mxu0 %v350
  %361 = vmatprep.subr.bf16.mxu0 0
  %362 = vmatpush1.bf16.msra.mxu0 %v349
  %363 = vmatprep.subr.bf16.mxu0 0
  %364 = vmatpush1.bf16.msra.mxu0 %v348
  %365 = vmatprep.subr.bf16.mxu0 0
  %366 = vmatpush1.bf16.msra.mxu0 %v347
  %367 = vmatprep.subr.bf16.mxu0 0
  %368 = vmatpush1.bf16.msra.mxu0 %v346
  %369 = vmatprep.subr.bf16.mxu0 0
  %370 = vmatpush1.bf16.msra.mxu0 %v345
  %371 = vmatprep.subr.bf16.mxu0 0
  %372 = vmatpush1.bf16.msra.mxu0 %v344
  %373 = vmatprep.subr.bf16.mxu0 0
  %374 = vmatpush1.bf16.msra.mxu0 %v343
  %375 = vmatprep.subr.bf16.mxu0 0
  %376 = vmatpush2.bf16.msra.mxu0 0
  %377 = vmatprep.subr.bf16.mxu0 0
  %378 = vmatpush2.bf16.msra.mxu0 0
  %379 = vmatprep.subr.bf16.mxu0 0
  %380 = vmatpush2.bf16.msra.mxu0 0
  %381 = vmatprep.subr.bf16.mxu0 0
  %382 = vmatpush2.bf16.msra.mxu0 0
  %383 = vmatprep.subr.bf16.mxu0 0
  %384 = vmatpush2.bf16.msra.mxu0 0
  %385 = vmatprep.subr.bf16.mxu0 0
  %386 = vmatpush2.bf16.msra.mxu0 0
  %387 = vmatprep.subr.bf16.mxu0 0
  %388 = vmatpush2.bf16.msra.mxu0 0
  %389 = vmatprep.subr.bf16.mxu0 0
  %390 = vmatpush2.bf16.msra.mxu0 0
  %391 = vmatprep.mubr.bf16.mxu0 0
  %392 = vmatmul.mubr.bf16.gmra.mxu0 %v287
  %v393 = vpop.f32.mrf.mxu0
  %v394 = vadd.f32 %v309, %v393
  %v395 = vpop.f32.mrf.mxu0
  %v396 = vpop.f32.mrf.mxu0
  %v397 = vpop.f32.mrf.mxu0
  %398 = vdwg.mxu0
  %399 = vmax.xlane.f32.xlu0 %v394
  %v400 = vpop.xlane.xlu0 %399
  %v401 = vsub.f32 %v394, %v400
  %v402 = vmul.f32 %v401, 1.442695
  %v403 = vpow.pop %v402
  %404 = vadd.xlane.f32.xlu0 %v403
  %v405 = vpop.xlane.xlu0 %404
  %v406 = vlog2.pop %v405
  %v407 = vmul.f32 %v406, 0.6931472
  %v408 = vsub.f32 %v401, %v407
  %409 = vst [vmem:[%s5] sm:$0xff] %v408
  // Predicated region
  $region22: #{network2_forward.1} parent=0 // pred_check
    _
  $region23: #{network2_forward.1} parent=0 // pred_check_branch
    %411 = sbr.rel (0) target = $region25
  $region24: #{network2_forward.1} parent=0 // pred_region
    _
  $region25: #{network2_forward.1} parent=0 // pred_fallthru
    _
  // Predicated region
  $region26: #{network2_forward.1} parent=0 // pred_check
    _
  $region27: #{network2_forward.1} parent=0 // pred_check_branch
    %413 = sbr.rel (0) target = $region29
  $region28: #{network2_forward.1} parent=0 // pred_region
    _
  $region29: #{network2_forward.1} parent=0 // pred_fallthru
    _

</llo_original>
